<compile_context>
chip_gen: v7x
topology: tpu7x:2x2x1
jax: 0.10.0
libtpu: 0.0.40
codegen_flags: <defaults>
</compile_context>

<pallas_src>
import jax
import jax.numpy as jnp
from jax.experimental import pallas as pl
from jax.experimental.pallas import tpu as pltpu
import numpy as np

_HI = jax.lax.Precision.HIGHEST


def _round_up(x, m):
    return ((x + m - 1) // m) * m


def attention_kernel(x_ref, wbig_ref, bc_ref, w2_ref, b2_ref, out_ref):
    # x_ref: (TB, L*E) flattened embeddings for TB batch rows (lane-dense).
    # h = ReLU( x_flat @ W_big + b_combo )
    #   = ReLU( sum_l emb_l @ Wv^T @ W1^T + L*bv@W1^T + b1 )
    h = jnp.dot(x_ref[...], wbig_ref[...],
                preferred_element_type=jnp.float32, precision=_HI) + bc_ref[...]
    h = jnp.maximum(h, 0.0)
    o = jnp.dot(h, w2_ref[...],
                preferred_element_type=jnp.float32, precision=_HI) + b2_ref[...]
    out_ref[...] = jax.nn.sigmoid(o)


def attention_forward(x_tokens, emb_table, wq, bq, wv, bv, w1, b1, w2, b2):
    """Pallas forward matching the PyTorch `Attention` module's output.

    lin_q and the softmax never influence the module's output (v_att is dead
    in the reference forward), so they are not sent to the kernel.
    """
    del wq, bq  # dead with respect to the module's output
    B, L = x_tokens.shape
    E = emb_table.shape[1]
    H = w1.shape[0]
    O = w2.shape[0]

    # Embedding lookup (glue).
    # TODO(synk): fuse this gather into the kernel via scalar prefetch + DMA.
    x_emb = jnp.take(emb_table, x_tokens, axis=0).astype(jnp.float32)   # (B, L, E)
    x_flat = x_emb.reshape(B, L * E)                                    # lane-dense 2-D

    # Linearity fold: lin_v + sum over L + mlp[0] collapse into one weight/bias.
    wc = jnp.dot(wv.T, w1.T, precision=_HI)                             # (E, H)
    w_big = jnp.tile(wc, (L, 1))                                        # (L*E, H)
    b_combo = (float(L) * jnp.dot(bv, w1.T, precision=_HI) + b1).reshape(1, H)

    # Final layer; pad output only to a sublane multiple (masked vst is fine
    # at this tiny store volume and avoids 128-lane padding traffic).
    O_pad = _round_up(O, 8)
    w2_p = jnp.pad(w2.T, ((0, 0), (0, O_pad - O)))                      # (H, O_pad)
    b2_p = jnp.pad(b2.reshape(1, O), ((0, 0), (0, O_pad - O)))          # (1, O_pad)

    # Batch tiling: big tiles amortize the ~0.35us/step grid overhead; keep
    # >=2 grid steps when possible so v7x's two TensorCores both get work.
    TARGET_TB = 1024
    if B <= 8:
        num_tiles = 1
    else:
        num_tiles = max(2, pl.cdiv(B, TARGET_TB))
    TB = _round_up(pl.cdiv(B, num_tiles), 8)
    B_pad = _round_up(B, TB)
    if B_pad != B:
        x_flat = jnp.pad(x_flat, ((0, B_pad - B), (0, 0)))

    K = L * E
    # Note: if the x DMA shows up exposed on v7x, the x BlockSpec can take
    # pipeline_mode=pl.Buffered(3) for an extra ~1 MiB of VMEM.
    out = pl.pallas_call(
        attention_kernel,
        out_shape=jax.ShapeDtypeStruct((B_pad, O_pad), jnp.float32),
        grid_spec=pltpu.PrefetchScalarGridSpec(
            num_scalar_prefetch=0,
            grid=(B_pad // TB,),
            in_specs=[
                pl.BlockSpec((TB, K), lambda b: (b, 0)),       # x_flat (batched)
                pl.BlockSpec((K, H), lambda b: (0, 0)),        # W_big
                pl.BlockSpec((1, H), lambda b: (0, 0)),        # b_combo
                pl.BlockSpec((H, O_pad), lambda b: (0, 0)),    # W2^T (padded)
                pl.BlockSpec((1, O_pad), lambda b: (0, 0)),    # b2 (padded)
            ],
            out_specs=pl.BlockSpec((TB, O_pad), lambda b: (b, 0)),
        ),
        compiler_params=pltpu.CompilerParams(
            dimension_semantics=("parallel",)),
    )(x_flat, w_big, b_combo, w2_p, b2_p)
    return out[:B, :O]                                                  # (B, O)


def reference_forward(x_tokens, emb_table, wq, bq, wv, bv, w1, b1, w2, b2):
    """Pure-JAX mirror of the PyTorch forward (unfolded), for verification."""
    x_emb = jnp.take(emb_table, x_tokens, axis=0)                       # (B, L, E)
    t_hat = jnp.mean(x_emb, axis=1)                                     # (B, E)
    q = (jnp.dot(t_hat, wq.T, precision=_HI) + bq)[:, None, :]          # (B, 1, E)
    attn = jax.nn.softmax(
        jnp.einsum('ble,bqe->blq', x_emb, q, precision=_HI), axis=1)    # (B, L, 1)
    v = jnp.dot(x_emb, wv.T, precision=_HI) + bv                        # (B, L, E)
    _ = v * attn                                                        # dead, as in the PyTorch module
    v_weighted = jnp.sum(v, axis=1)                                     # (B, E)
    h = jax.nn.relu(jnp.dot(v_weighted, w1.T, precision=_HI) + b1)
    return jax.nn.sigmoid(jnp.dot(h, w2.T, precision=_HI) + b2)


if __name__ == "__main__":
    # Small deterministic problem: vocab=50, input_size(E)=32, hidden=32, out=4
    B, L, V, E, H, O = 2, 8, 50, 32, 32, 4

    key = jax.random.PRNGKey(0)
    keys = jax.random.split(key, 10)

    emb_table = jax.random.normal(keys[0], (V, E), dtype=jnp.float32)

    def linear_init(kw, kb, out_f, in_f):
        bound = 1.0 / np.sqrt(in_f)
        w = jax.random.uniform(kw, (out_f, in_f), jnp.float32, -bound, bound)
        b = jax.random.uniform(kb, (out_f,), jnp.float32, -bound, bound)
        return w, b

    wq, bq = linear_init(keys[1], keys[2], E, E)   # lin_q
    wv, bv = linear_init(keys[3], keys[4], E, E)   # lin_v
    w1, b1 = linear_init(keys[5], keys[6], H, E)   # mlp[0]
    w2, b2 = linear_init(keys[7], keys[8], O, H)   # mlp[2]

    x_tokens = jax.random.randint(keys[9], (B, L), 0, V, dtype=jnp.int32)

    out = attention_forward(x_tokens, emb_table, wq, bq, wv, bv, w1, b1, w2, b2)
    out = jax.block_until_ready(out)

    ref = reference_forward(x_tokens, emb_table, wq, bq, wv, bv, w1, b1, w2, b2)
    np.testing.assert_allclose(np.asarray(out), np.asarray(ref),
                               rtol=1e-5, atol=1e-5)

    print("KERNEL_OK")
</pallas_src>

<mosaic_0001>
module attributes {stable_mosaic.version = 11 : i64} {
  func.func @attention_kernel(%arg0: i32, %arg1: memref<8x256xf32, #tpu.memory_space<vmem>>, %arg2: memref<256x32xf32, #tpu.memory_space<vmem>>, %arg3: memref<1x32xf32, #tpu.memory_space<vmem>>, %arg4: memref<32x8xf32, #tpu.memory_space<vmem>>, %arg5: memref<1x8xf32, #tpu.memory_space<vmem>>, %arg6: memref<8x8xf32, #tpu.memory_space<vmem>>) attributes {dimension_semantics = [#tpu.dimension_semantics<parallel>], iteration_bounds = array<i64: 1>, scalar_prefetch = 0 : i64, scratch_operands = 0 : i64, tpu.core_type = #tpu.core_type<tc>, window_params = [{transform_indices = @transform_0, window_bounds = array<i64: 8, 256>}, {pipeline_mode = #tpu.pipeline_mode<synchronous>, transform_indices = @transform_1, window_bounds = array<i64: 256, 32>}, {pipeline_mode = #tpu.pipeline_mode<synchronous>, transform_indices = @transform_2, window_bounds = array<i64: 1, 32>}, {pipeline_mode = #tpu.pipeline_mode<synchronous>, transform_indices = @transform_3, window_bounds = array<i64: 32, 8>}, {pipeline_mode = #tpu.pipeline_mode<synchronous>, transform_indices = @transform_4, window_bounds = array<i64: 1, 8>}, {transform_indices = @transform_5, window_bounds = array<i64: 8, 8>}]} {
    %c0 = arith.constant 0 : index
    %c0_0 = arith.constant 0 : index
    %0 = vector.load %arg1[%c0, %c0_0] : memref<8x256xf32, #tpu.memory_space<vmem>>, vector<8x256xf32>
    %c0_1 = arith.constant 0 : index
    %c0_2 = arith.constant 0 : index
    %1 = vector.load %arg2[%c0_1, %c0_2] : memref<256x32xf32, #tpu.memory_space<vmem>>, vector<256x32xf32>
    %cst = arith.constant dense<0.000000e+00> : vector<8x32xf32>
    %2 = tpu.matmul %0, %1, %cst {dimension_numbers = #tpu.dot_dimension_numbers<[1], [0], [0], [1], [0, 0, 1, 1], [], []>, precision = #tpu.contract_precision<fp32>} : vector<8x256xf32>, vector<256x32xf32>, vector<8x32xf32> -> vector<8x32xf32>
    %c0_3 = arith.constant 0 : index
    %c0_4 = arith.constant 0 : index
    %3 = vector.load %arg3[%c0_3, %c0_4] : memref<1x32xf32, #tpu.memory_space<vmem>>, vector<1x32xf32>
    %4 = vector.broadcast %3 : vector<1x32xf32> to vector<8x32xf32>
    %5 = arith.addf %2, %4 : vector<8x32xf32>
    %cst_5 = arith.constant 0.000000e+00 : f32
    %6 = vector.broadcast %cst_5 : f32 to vector<8x32xf32>
    %7 = arith.maximumf %5, %6 : vector<8x32xf32>
    %c0_6 = arith.constant 0 : index
    %c0_7 = arith.constant 0 : index
    %8 = vector.load %arg4[%c0_6, %c0_7] : memref<32x8xf32, #tpu.memory_space<vmem>>, vector<32x8xf32>
    %cst_8 = arith.constant dense<0.000000e+00> : vector<8x8xf32>
    %9 = tpu.matmul %7, %8, %cst_8 {dimension_numbers = #tpu.dot_dimension_numbers<[1], [0], [0], [1], [0, 0, 1, 1], [], []>, precision = #tpu.contract_precision<fp32>} : vector<8x32xf32>, vector<32x8xf32>, vector<8x8xf32> -> vector<8x8xf32>
    %c0_9 = arith.constant 0 : index
    %c0_10 = arith.constant 0 : index
    %10 = vector.load %arg5[%c0_9, %c0_10] : memref<1x8xf32, #tpu.memory_space<vmem>>, vector<1x8xf32>
    %11 = vector.broadcast %10 : vector<1x8xf32> to vector<8x8xf32>
    %12 = arith.addf %9, %11 : vector<8x8xf32>
    %13 = arith.negf %12 : vector<8x8xf32>
    %14 = math.exp %13 : vector<8x8xf32>
    %cst_11 = arith.constant 1.000000e+00 : f32
    %15 = vector.broadcast %cst_11 : f32 to vector<8x8xf32>
    %16 = arith.addf %15, %14 : vector<8x8xf32>
    %17 = arith.divf %15, %16 : vector<8x8xf32>
    %c0_12 = arith.constant 0 : index
    %c0_13 = arith.constant 0 : index
    %18 = vector.load %arg6[%c0_12, %c0_13] : memref<8x8xf32, #tpu.memory_space<vmem>>, vector<8x8xf32>
    tpu.vector_store %arg6[%c0_12, %c0_13], %17 {strides = array<i32>} : memref<8x8xf32, #tpu.memory_space<vmem>>, vector<8x8xf32>,
    return
  }
  func.func @transform_0(%arg0: i32) -> (i32, i32) {
    %c0_i32 = arith.constant 0 : i32
    %c0_i32_0 = arith.constant 0 : i32
    return %arg0, %c0_i32 : i32, i32
  }
  func.func @transform_1(%arg0: i32) -> (i32, i32) {
    %c0_i32 = arith.constant 0 : i32
    %c0_i32_0 = arith.constant 0 : i32
    %c0_i32_1 = arith.constant 0 : i32
    return %c0_i32, %c0_i32_0 : i32, i32
  }
  func.func @transform_2(%arg0: i32) -> (i32, i32) {
    %c0_i32 = arith.constant 0 : i32
    %c0_i32_0 = arith.constant 0 : i32
    %c0_i32_1 = arith.constant 0 : i32
    return %c0_i32, %c0_i32_0 : i32, i32
  }
  func.func @transform_3(%arg0: i32) -> (i32, i32) {
    %c0_i32 = arith.constant 0 : i32
    %c0_i32_0 = arith.constant 0 : i32
    %c0_i32_1 = arith.constant 0 : i32
    return %c0_i32, %c0_i32_0 : i32, i32
  }
  func.func @transform_4(%arg0: i32) -> (i32, i32) {
    %c0_i32 = arith.constant 0 : i32
    %c0_i32_0 = arith.constant 0 : i32
    %c0_i32_1 = arith.constant 0 : i32
    return %c0_i32, %c0_i32_0 : i32, i32
  }
  func.func @transform_5(%arg0: i32) -> (i32, i32) {
    %c0_i32 = arith.constant 0 : i32
    %c0_i32_0 = arith.constant 0 : i32
    return %arg0, %c0_i32 : i32, i32
  }
}

</mosaic_0001>

<llo_original>
// kernel: tpu_custom_call.1
$region0: #{tpu_custom_call.1}
  #allocation0 [shape = 'u32[]', space=smem, size = 0x4, offset = 0x4, fixed_abs, tag = 'smem constant byte address 0x4 - core index']
  #allocation1 [shape = 'u32[144,128]{1,0:T(1,128)}', space=vmem, size = 0x12000, scoped, tag = 'internal scratch']
  %s0 = inlined_call_operand.vmem [shape: f32[8,256], index: 0, kind: input, shape index: {}]
  %s1 = inlined_call_operand.vmem [shape: f32[256,32], index: 1, kind: input, shape index: {}]
  %s2 = inlined_call_operand.vmem [shape: f32[1,32], index: 2, kind: input, shape index: {}]
  %s3 = inlined_call_operand.vmem [shape: f32[32,8], index: 3, kind: input, shape index: {}]
  %s4 = inlined_call_operand.vmem [shape: f32[1,8], index: 4, kind: input, shape index: {}]
  %s5 = inlined_call_operand.hbm [shape: f32[8,8], index: 5, kind: output, shape index: {}]
  %s6 = sld [smem:[#allocation0]]
  $region30: #{tpu_custom_call.1} parent=0
    _
  %s8 = ssub.s32 1, %s6
  %s9 = scalar_select 0, %s8, %s6
  $region1: #{tpu_custom_call.1} parent=0
    #allocation2 [shape = 'u8[4096]{0}', space=vmem, size = 0x1000, scoped, tag = 'output window, operand 0, single buffered']
    #allocation3 [shape = 's32[1]{0}', space=sflag, size = 0x4, scoped, tag = 'scoped memory for tpu_custom_call.1']
    %10 = vsyncpa [#allocation3], 0
    // Predicated region
    $region2: #{tpu_custom_call.1} parent=1 // pred_check
      _
    $region3: #{tpu_custom_call.1} parent=1 // pred_check_branch
      %12 = sbr.rel (0) target = $region5
    $region4: #{tpu_custom_call.1} parent=1 // pred_region
      _
    $region5: #{tpu_custom_call.1} parent=1 // pred_fallthru
      _
    // Predicated region
    $region6: #{tpu_custom_call.1} parent=1 // pred_check
      _
    $region7: #{tpu_custom_call.1} parent=1 // pred_check_branch
      %14 = sbr.rel (0) target = $region9
    $region8: #{tpu_custom_call.1} parent=1 // pred_region
      _
    $region9: #{tpu_custom_call.1} parent=1 // pred_fallthru
      _
    // Predicated region
    $region10: #{tpu_custom_call.1} parent=1 // pred_check
      _
    $region11: #{tpu_custom_call.1} parent=1 // pred_check_branch
      %16 = sbr.rel (0) target = $region13
    $region12: #{tpu_custom_call.1} parent=1 // pred_region
      _
    $region13: #{tpu_custom_call.1} parent=1 // pred_fallthru
      _
    // Predicated region
    $region14: #{tpu_custom_call.1} parent=1 // pred_check
      _
    $region15: #{tpu_custom_call.1} parent=1 // pred_check_branch
      %18 = sbr.rel (0) target = $region17
    $region16: #{tpu_custom_call.1} parent=1 // pred_region
      _
    $region17: #{tpu_custom_call.1} parent=1 // pred_fallthru
      _
    // Predicated region
    $region18: #{tpu_custom_call.1} parent=1 // pred_check
      _
    $region19: #{tpu_custom_call.1} parent=1 // pred_check_branch
      %20 = sbr.rel (0) target = $region21
    $region20: #{tpu_custom_call.1} parent=1 // pred_region
      _
    $region21: #{tpu_custom_call.1} parent=1 // pred_fallthru
      _
    %v21 = vld [vmem:[%s0] sm:$0xff]
    %v22 = vld [vmem:[%s0 + $0x8] sm:$0xff]
    %v23 = vld [vmem:[%s1] sm:$0xff]
    %v24 = vld [vmem:[%s1 + $0x8] sm:$0xff]
    %v25 = vld [vmem:[%s1 + $0x10] sm:$0xff]
    %v26 = vld [vmem:[%s1 + $0x18] sm:$0xff]
    %v27 = vld [vmem:[%s1 + $0x20] sm:$0xff]
    %v28 = vld [vmem:[%s1 + $0x28] sm:$0xff]
    %v29 = vld [vmem:[%s1 + $0x30] sm:$0xff]
    %v30 = vld [vmem:[%s1 + $0x38] sm:$0xff]
    %v31 = vld [vmem:[%s1 + $0x40] sm:$0xff]
    %v32 = vld [vmem:[%s1 + $0x48] sm:$0xff]
    %v33 = vld [vmem:[%s1 + $0x50] sm:$0xff]
    %v34 = vld [vmem:[%s1 + $0x58] sm:$0xff]
    %v35 = vld [vmem:[%s1 + $0x60] sm:$0xff]
    %v36 = vld [vmem:[%s1 + $0x68] sm:$0xff]
    %v37 = vld [vmem:[%s1 + $0x70] sm:$0xff]
    %v38 = vld [vmem:[%s1 + $0x78] sm:$0xff]
    %v39 = vld [vmem:[%s1 + $0x80] sm:$0xff]
    %v40 = vld [vmem:[%s1 + $0x88] sm:$0xff]
    %v41 = vld [vmem:[%s1 + $0x90] sm:$0xff]
    %v42 = vld [vmem:[%s1 + $0x98] sm:$0xff]
    %v43 = vld [vmem:[%s1 + $0xa0] sm:$0xff]
    %v44 = vld [vmem:[%s1 + $0xa8] sm:$0xff]
    %v45 = vld [vmem:[%s1 + $0xb0] sm:$0xff]
    %v46 = vld [vmem:[%s1 + $0xb8] sm:$0xff]
    %v47 = vld [vmem:[%s1 + $0xc0] sm:$0xff]
    %v48 = vld [vmem:[%s1 + $0xc8] sm:$0xff]
    %v49 = vld [vmem:[%s1 + $0xd0] sm:$0xff]
    %v50 = vld [vmem:[%s1 + $0xd8] sm:$0xff]
    %v51 = vld [vmem:[%s1 + $0xe0] sm:$0xff]
    %v52 = vld [vmem:[%s1 + $0xe8] sm:$0xff]
    %v53 = vld [vmem:[%s1 + $0xf0] sm:$0xff]
    %v54 = vld [vmem:[%s1 + $0xf8] sm:$0xff]
    %v55 = vld [vmem:[%s2] sm:$0x1]
    %v57 = vlaneseq
    %v58 = vshrl.u32 %v57, 7
    %v59 = vsub.s32 0, %v58
    %v60 = vrot.slane %v55, %v59
    %62 = vmatprep.subr.mxu0 0.0
    %v63 = vand.u32 %v23, 4294901760
    %64 = vmatpush1.msra.mxu0 %v63
    %65 = vmatprep.subr.mxu0 0.0
    %v66 = vand.u32 %v24, 4294901760
    %67 = vmatpush1.msra.mxu0 %v66
    %68 = vmatprep.subr.mxu0 0.0
    %v69 = vand.u32 %v25, 4294901760
    %70 = vmatpush1.msra.mxu0 %v69
    %71 = vmatprep.subr.mxu0 0.0
    %v72 = vand.u32 %v26, 4294901760
    %73 = vmatpush1.msra.mxu0 %v72
    %74 = vmatprep.subr.mxu0 0.0
    %v75 = vand.u32 %v27, 4294901760
    %76 = vmatpush1.msra.mxu0 %v75
    %77 = vmatprep.subr.mxu0 0.0
    %v78 = vand.u32 %v28, 4294901760
    %79 = vmatpush1.msra.mxu0 %v78
    %80 = vmatprep.subr.mxu0 0.0
    %v81 = vand.u32 %v29, 4294901760
    %82 = vmatpush1.msra.mxu0 %v81
    %83 = vmatprep.subr.mxu0 0.0
    %v84 = vand.u32 %v30, 4294901760
    %85 = vmatpush1.msra.mxu0 %v84
    %86 = vmatprep.subr.mxu0 0.0
    %v87 = vand.u32 %v31, 4294901760
    %88 = vmatpush1.msra.mxu0 %v87
    %89 = vmatprep.subr.mxu0 0.0
    %v90 = vand.u32 %v32, 4294901760
    %91 = vmatpush1.msra.mxu0 %v90
    %92 = vmatprep.subr.mxu0 0.0
    %v93 = vand.u32 %v33, 4294901760
    %94 = vmatpush1.msra.mxu0 %v93
    %95 = vmatprep.subr.mxu0 0.0
    %v96 = vand.u32 %v34, 4294901760
    %97 = vmatpush1.msra.mxu0 %v96
    %98 = vmatprep.subr.mxu0 0.0
    %v99 = vand.u32 %v35, 4294901760
    %100 = vmatpush1.msra.mxu0 %v99
    %101 = vmatprep.subr.mxu0 0.0
    %v102 = vand.u32 %v36, 4294901760
    %103 = vmatpush1.msra.mxu0 %v102
    %104 = vmatprep.subr.mxu0 0.0
    %v105 = vand.u32 %v37, 4294901760
    %106 = vmatpush1.msra.mxu0 %v105
    %107 = vmatprep.subr.mxu0 0.0
    %v108 = vand.u32 %v38, 4294901760
    %109 = vmatpush1.msra.mxu0 %v108
    %110 = vmatprep.subr.mxu0 0.0
    %v111 = vand.u32 %v39, 4294901760
    %112 = vmatpush1.msra.mxu0 %v111
    %113 = vmatprep.subr.mxu0 0.0
    %v114 = vand.u32 %v40, 4294901760
    %115 = vmatpush1.msra.mxu0 %v114
    %116 = vmatprep.subr.mxu0 0.0
    %v117 = vand.u32 %v41, 4294901760
    %118 = vmatpush1.msra.mxu0 %v117
    %119 = vmatprep.subr.mxu0 0.0
    %v120 = vand.u32 %v42, 4294901760
    %121 = vmatpush1.msra.mxu0 %v120
    %122 = vmatprep.subr.mxu0 0.0
    %v123 = vand.u32 %v43, 4294901760
    %124 = vmatpush1.msra.mxu0 %v123
    %125 = vmatprep.subr.mxu0 0.0
    %v126 = vand.u32 %v44, 4294901760
    %127 = vmatpush1.msra.mxu0 %v126
    %128 = vmatprep.subr.mxu0 0.0
    %v129 = vand.u32 %v45, 4294901760
    %130 = vmatpush1.msra.mxu0 %v129
    %131 = vmatprep.subr.mxu0 0.0
    %v132 = vand.u32 %v46, 4294901760
    %133 = vmatpush1.msra.mxu0 %v132
    %134 = vmatprep.subr.mxu0 0.0
    %v135 = vand.u32 %v47, 4294901760
    %136 = vmatpush1.msra.mxu0 %v135
    %137 = vmatprep.subr.mxu0 0.0
    %v138 = vand.u32 %v48, 4294901760
    %139 = vmatpush1.msra.mxu0 %v138
    %140 = vmatprep.subr.mxu0 0.0
    %v141 = vand.u32 %v49, 4294901760
    %142 = vmatpush1.msra.mxu0 %v141
    %143 = vmatprep.subr.mxu0 0.0
    %v144 = vand.u32 %v50, 4294901760
    %145 = vmatpush1.msra.mxu0 %v144
    %146 = vmatprep.subr.mxu0 0.0
    %v147 = vand.u32 %v51, 4294901760
    %148 = vmatpush1.msra.mxu0 %v147
    %149 = vmatprep.subr.mxu0 0.0
    %v150 = vand.u32 %v52, 4294901760
    %151 = vmatpush1.msra.mxu0 %v150
    %152 = vmatprep.subr.mxu0 0.0
    %v153 = vand.u32 %v53, 4294901760
    %154 = vmatpush1.msra.mxu0 %v153
    %155 = vmatprep.subr.mxu0 0.0
    %v156 = vand.u32 %v54, 4294901760
    %157 = vmatpush1.msra.mxu0 %v156
    %v158 = vand.u32 %v22, 4294901760
    %v159 = vsub.f32 %v22, %v158
    %v160 = vand.u32 %v159, 4294901760
    %v161 = vsub.f32 %v159, %v160
    %v162 = vand.u32 %v161, 4294901760
    %163 = vmatprep.mubr.f32.mxu0 %v162
    %v164 = vand.u32 %v21, 4294901760
    %v165 = vsub.f32 %v21, %v164
    %v166 = vand.u32 %v165, 4294901760
    %v167 = vsub.f32 %v165, %v166
    %v168 = vand.u32 %v167, 4294901760
    %169 = vmatmul.mubr.f32.gmra.mrb[0].mxu0 %v168
    %v170 = vpop.f32.mrb[0].mxu0
    %v171 = vadd.f32 %v60, %v170
    %v172 = vpop.f32.mrb[0].mxu0
    %173 = vdwg.mxu0
    %174 = vmatprep.subr.mxu0 0.0
    %v175 = vand.u32 %v23, 4294901760
    %v176 = vsub.f32 %v23, %v175
    %v177 = vand.u32 %v176, 4294901760
    %v178 = vsub.f32 %v176, %v177
    %v179 = vand.u32 %v178, 4294901760
    %180 = vmatpush1.msra.mxu0 %v179
    %181 = vmatprep.subr.mxu0 0.0
    %v182 = vand.u32 %v24, 4294901760
    %v183 = vsub.f32 %v24, %v182
    %v184 = vand.u32 %v183, 4294901760
    %v185 = vsub.f32 %v183, %v184
    %v186 = vand.u32 %v185, 4294901760
    %187 = vmatpush1.msra.mxu0 %v186
    %188 = vmatprep.subr.mxu0 0.0
    %v189 = vand.u32 %v25, 4294901760
    %v190 = vsub.f32 %v25, %v189
    %v191 = vand.u32 %v190, 4294901760
    %v192 = vsub.f32 %v190, %v191
    %v193 = vand.u32 %v192, 4294901760
    %194 = vmatpush1.msra.mxu0 %v193
    %195 = vmatprep.subr.mxu0 0.0
    %v196 = vand.u32 %v26, 4294901760
    %v197 = vsub.f32 %v26, %v196
    %v198 = vand.u32 %v197, 4294901760
    %v199 = vsub.f32 %v197, %v198
    %v200 = vand.u32 %v199, 4294901760
    %201 = vmatpush1.msra.mxu0 %v200
    %202 = vmatprep.subr.mxu0 0.0
    %v203 = vand.u32 %v27, 4294901760
    %v204 = vsub.f32 %v27, %v203
    %v205 = vand.u32 %v204, 4294901760
    %v206 = vsub.f32 %v204, %v205
    %v207 = vand.u32 %v206, 4294901760
    %208 = vmatpush1.msra.mxu0 %v207
    %209 = vmatprep.subr.mxu0 0.0
    %v210 = vand.u32 %v28, 4294901760
    %v211 = vsub.f32 %v28, %v210
    %v212 = vand.u32 %v211, 4294901760
    %v213 = vsub.f32 %v211, %v212
    %v214 = vand.u32 %v213, 4294901760
    %215 = vmatpush1.msra.mxu0 %v214
    %216 = vmatprep.subr.mxu0 0.0
    %v217 = vand.u32 %v29, 4294901760
    %v218 = vsub.f32 %v29, %v217
    %v219 = vand.u32 %v218, 4294901760
    %v220 = vsub.f32 %v218, %v219
    %v221 = vand.u32 %v220, 4294901760
    %222 = vmatpush1.msra.mxu0 %v221
    %223 = vmatprep.subr.mxu0 0.0
    %v224 = vand.u32 %v30, 4294901760
    %v225 = vsub.f32 %v30, %v224
    %v226 = vand.u32 %v225, 4294901760
    %v227 = vsub.f32 %v225, %v226
    %v228 = vand.u32 %v227, 4294901760
    %229 = vmatpush1.msra.mxu0 %v228
    %230 = vmatprep.subr.mxu0 0.0
    %v231 = vand.u32 %v31, 4294901760
    %v232 = vsub.f32 %v31, %v231
    %v233 = vand.u32 %v232, 4294901760
    %v234 = vsub.f32 %v232, %v233
    %v235 = vand.u32 %v234, 4294901760
    %236 = vmatpush1.msra.mxu0 %v235
    %237 = vmatprep.subr.mxu0 0.0
    %v238 = vand.u32 %v32, 4294901760
    %v239 = vsub.f32 %v32, %v238
    %v240 = vand.u32 %v239, 4294901760
    %v241 = vsub.f32 %v239, %v240
    %v242 = vand.u32 %v241, 4294901760
    %243 = vmatpush1.msra.mxu0 %v242
    %244 = vmatprep.subr.mxu0 0.0
    %v245 = vand.u32 %v33, 4294901760
    %v246 = vsub.f32 %v33, %v245
    %v247 = vand.u32 %v246, 4294901760
    %v248 = vsub.f32 %v246, %v247
    %v249 = vand.u32 %v248, 4294901760
    %250 = vmatpush1.msra.mxu0 %v249
    %251 = vmatprep.subr.mxu0 0.0
    %v252 = vand.u32 %v34, 4294901760
    %v253 = vsub.f32 %v34, %v252
    %v254 = vand.u32 %v253, 4294901760
    %v255 = vsub.f32 %v253, %v254
    %v256 = vand.u32 %v255, 4294901760
    %257 = vmatpush1.msra.mxu0 %v256
    %258 = vmatprep.subr.mxu0 0.0
    %v259 = vand.u32 %v35, 4294901760
    %v260 = vsub.f32 %v35, %v259
    %v261 = vand.u32 %v260, 4294901760
    %v262 = vsub.f32 %v260, %v261
    %v263 = vand.u32 %v262, 4294901760
    %264 = vmatpush1.msra.mxu0 %v263
    %265 = vmatprep.subr.mxu0 0.0
    %v266 = vand.u32 %v36, 4294901760
    %v267 = vsub.f32 %v36, %v266
    %v268 = vand.u32 %v267, 4294901760
    %v269 = vsub.f32 %v267, %v268
    %v270 = vand.u32 %v269, 4294901760
    %271 = vmatpush1.msra.mxu0 %v270
    %272 = vmatprep.subr.mxu0 0.0
    %v273 = vand.u32 %v37, 4294901760
    %v274 = vsub.f32 %v37, %v273
    %v275 = vand.u32 %v274, 4294901760
    %v276 = vsub.f32 %v274, %v275
    %v277 = vand.u32 %v276, 4294901760
    %278 = vmatpush1.msra.mxu0 %v277
    %279 = vmatprep.subr.mxu0 0.0
    %v280 = vand.u32 %v38, 4294901760
    %v281 = vsub.f32 %v38, %v280
    %v282 = vand.u32 %v281, 4294901760
    %v283 = vsub.f32 %v281, %v282
    %v284 = vand.u32 %v283, 4294901760
    %285 = vmatpush1.msra.mxu0 %v284
    %286 = vmatprep.subr.mxu0 0.0
    %v287 = vand.u32 %v39, 4294901760
    %v288 = vsub.f32 %v39, %v287
    %v289 = vand.u32 %v288, 4294901760
    %v290 = vsub.f32 %v288, %v289
    %v291 = vand.u32 %v290, 4294901760
    %292 = vmatpush1.msra.mxu0 %v291
    %293 = vmatprep.subr.mxu0 0.0
    %v294 = vand.u32 %v40, 4294901760
    %v295 = vsub.f32 %v40, %v294
    %v296 = vand.u32 %v295, 4294901760
    %v297 = vsub.f32 %v295, %v296
    %v298 = vand.u32 %v297, 4294901760
    %299 = vmatpush1.msra.mxu0 %v298
    %300 = vmatprep.subr.mxu0 0.0
    %v301 = vand.u32 %v41, 4294901760
    %v302 = vsub.f32 %v41, %v301
    %v303 = vand.u32 %v302, 4294901760
    %v304 = vsub.f32 %v302, %v303
    %v305 = vand.u32 %v304, 4294901760
    %306 = vmatpush1.msra.mxu0 %v305
    %307 = vmatprep.subr.mxu0 0.0
    %v308 = vand.u32 %v42, 4294901760
    %v309 = vsub.f32 %v42, %v308
    %v310 = vand.u32 %v309, 4294901760
    %v311 = vsub.f32 %v309, %v310
    %v312 = vand.u32 %v311, 4294901760
    %313 = vmatpush1.msra.mxu0 %v312
    %314 = vmatprep.subr.mxu0 0.0
    %v315 = vand.u32 %v43, 4294901760
    %v316 = vsub.f32 %v43, %v315
    %v317 = vand.u32 %v316, 4294901760
    %v318 = vsub.f32 %v316, %v317
    %v319 = vand.u32 %v318, 4294901760
    %320 = vmatpush1.msra.mxu0 %v319
    %321 = vmatprep.subr.mxu0 0.0
    %v322 = vand.u32 %v44, 4294901760
    %v323 = vsub.f32 %v44, %v322
    %v324 = vand.u32 %v323, 4294901760
    %v325 = vsub.f32 %v323, %v324
    %v326 = vand.u32 %v325, 4294901760
    %327 = vmatpush1.msra.mxu0 %v326
    %328 = vmatprep.subr.mxu0 0.0
    %v329 = vand.u32 %v45, 4294901760
    %v330 = vsub.f32 %v45, %v329
    %v331 = vand.u32 %v330, 4294901760
    %v332 = vsub.f32 %v330, %v331
    %v333 = vand.u32 %v332, 4294901760
    %334 = vmatpush1.msra.mxu0 %v333
    %335 = vmatprep.subr.mxu0 0.0
    %v336 = vand.u32 %v46, 4294901760
    %v337 = vsub.f32 %v46, %v336
    %v338 = vand.u32 %v337, 4294901760
    %v339 = vsub.f32 %v337, %v338
    %v340 = vand.u32 %v339, 4294901760
    %341 = vmatpush1.msra.mxu0 %v340
    %342 = vmatprep.subr.mxu0 0.0
    %v343 = vand.u32 %v47, 4294901760
    %v344 = vsub.f32 %v47, %v343
    %v345 = vand.u32 %v344, 4294901760
    %v346 = vsub.f32 %v344, %v345
    %v347 = vand.u32 %v346, 4294901760
    %348 = vmatpush1.msra.mxu0 %v347
    %349 = vmatprep.subr.mxu0 0.0
    %v350 = vand.u32 %v48, 4294901760
    %v351 = vsub.f32 %v48, %v350
    %v352 = vand.u32 %v351, 4294901760
    %v353 = vsub.f32 %v351, %v352
    %v354 = vand.u32 %v353, 4294901760
    %355 = vmatpush1.msra.mxu0 %v354
    %356 = vmatprep.subr.mxu0 0.0
    %v357 = vand.u32 %v49, 4294901760
    %v358 = vsub.f32 %v49, %v357
    %v359 = vand.u32 %v358, 4294901760
    %v360 = vsub.f32 %v358, %v359
    %v361 = vand.u32 %v360, 4294901760
    %362 = vmatpush1.msra.mxu0 %v361
    %363 = vmatprep.subr.mxu0 0.0
    %v364 = vand.u32 %v50, 4294901760
    %v365 = vsub.f32 %v50, %v364
    %v366 = vand.u32 %v365, 4294901760
    %v367 = vsub.f32 %v365, %v366
    %v368 = vand.u32 %v367, 4294901760
    %369 = vmatpush1.msra.mxu0 %v368
    %370 = vmatprep.subr.mxu0 0.0
    %v371 = vand.u32 %v51, 4294901760
    %v372 = vsub.f32 %v51, %v371
    %v373 = vand.u32 %v372, 4294901760
    %v374 = vsub.f32 %v372, %v373
    %v375 = vand.u32 %v374, 4294901760
    %376 = vmatpush1.msra.mxu0 %v375
    %377 = vmatprep.subr.mxu0 0.0
    %v378 = vand.u32 %v52, 4294901760
    %v379 = vsub.f32 %v52, %v378
    %v380 = vand.u32 %v379, 4294901760
    %v381 = vsub.f32 %v379, %v380
    %v382 = vand.u32 %v381, 4294901760
    %383 = vmatpush1.msra.mxu0 %v382
    %384 = vmatprep.subr.mxu0 0.0
    %v385 = vand.u32 %v53, 4294901760
    %v386 = vsub.f32 %v53, %v385
    %v387 = vand.u32 %v386, 4294901760
    %v388 = vsub.f32 %v386, %v387
    %v389 = vand.u32 %v388, 4294901760
    %390 = vmatpush1.msra.mxu0 %v389
    %391 = vmatprep.subr.mxu0 0.0
    %v392 = vand.u32 %v54, 4294901760
    %v393 = vsub.f32 %v54, %v392
    %v394 = vand.u32 %v393, 4294901760
    %v395 = vsub.f32 %v393, %v394
    %v396 = vand.u32 %v395, 4294901760
    %397 = vmatpush1.msra.mxu0 %v396
    %v398 = vand.u32 %v22, 4294901760
    %399 = vmatprep.mubr.f32.mxu0 %v398
    %v400 = vand.u32 %v21, 4294901760
    %401 = vmatmul.mubr.f32.gmra.mrb[0].mxu0 %v400
    %v402 = vpop.f32.mrb[0].mxu0
    %v403 = vadd.f32 %v171, %v402
    %v404 = vpop.f32.mrb[0].mxu0
    %405 = vdwg.mxu0
    %406 = vmatprep.subr.mxu0 0.0
    %v407 = vand.u32 %v23, 4294901760
    %v408 = vsub.f32 %v23, %v407
    %409 = vmatpush1.msra.mxu0 %v408
    %410 = vmatprep.subr.mxu0 0.0
    %v411 = vand.u32 %v24, 4294901760
    %v412 = vsub.f32 %v24, %v411
    %413 = vmatpush1.msra.mxu0 %v412
    %414 = vmatprep.subr.mxu0 0.0
    %v415 = vand.u32 %v25, 4294901760
    %v416 = vsub.f32 %v25, %v415
    %417 = vmatpush1.msra.mxu0 %v416
    %418 = vmatprep.subr.mxu0 0.0
    %v419 = vand.u32 %v26, 4294901760
    %v420 = vsub.f32 %v26, %v419
    %421 = vmatpush1.msra.mxu0 %v420
    %422 = vmatprep.subr.mxu0 0.0
    %v423 = vand.u32 %v27, 4294901760
    %v424 = vsub.f32 %v27, %v423
    %425 = vmatpush1.msra.mxu0 %v424
    %426 = vmatprep.subr.mxu0 0.0
    %v427 = vand.u32 %v28, 4294901760
    %v428 = vsub.f32 %v28, %v427
    %429 = vmatpush1.msra.mxu0 %v428
    %430 = vmatprep.subr.mxu0 0.0
    %v431 = vand.u32 %v29, 4294901760
    %v432 = vsub.f32 %v29, %v431
    %433 = vmatpush1.msra.mxu0 %v432
    %434 = vmatprep.subr.mxu0 0.0
    %v435 = vand.u32 %v30, 4294901760
    %v436 = vsub.f32 %v30, %v435
    %437 = vmatpush1.msra.mxu0 %v436
    %438 = vmatprep.subr.mxu0 0.0
    %v439 = vand.u32 %v31, 4294901760
    %v440 = vsub.f32 %v31, %v439
    %441 = vmatpush1.msra.mxu0 %v440
    %442 = vmatprep.subr.mxu0 0.0
    %v443 = vand.u32 %v32, 4294901760
    %v444 = vsub.f32 %v32, %v443
    %445 = vmatpush1.msra.mxu0 %v444
    %446 = vmatprep.subr.mxu0 0.0
    %v447 = vand.u32 %v33, 4294901760
    %v448 = vsub.f32 %v33, %v447
    %449 = vmatpush1.msra.mxu0 %v448
    %450 = vmatprep.subr.mxu0 0.0
    %v451 = vand.u32 %v34, 4294901760
    %v452 = vsub.f32 %v34, %v451
    %453 = vmatpush1.msra.mxu0 %v452
    %454 = vmatprep.subr.mxu0 0.0
    %v455 = vand.u32 %v35, 4294901760
    %v456 = vsub.f32 %v35, %v455
    %457 = vmatpush1.msra.mxu0 %v456
    %458 = vmatprep.subr.mxu0 0.0
    %v459 = vand.u32 %v36, 4294901760
    %v460 = vsub.f32 %v36, %v459
    %461 = vmatpush1.msra.mxu0 %v460
    %462 = vmatprep.subr.mxu0 0.0
    %v463 = vand.u32 %v37, 4294901760
    %v464 = vsub.f32 %v37, %v463
    %465 = vmatpush1.msra.mxu0 %v464
    %466 = vmatprep.subr.mxu0 0.0
    %v467 = vand.u32 %v38, 4294901760
    %v468 = vsub.f32 %v38, %v467
    %469 = vmatpush1.msra.mxu0 %v468
    %470 = vmatprep.subr.mxu0 0.0
    %v471 = vand.u32 %v39, 4294901760
    %v472 = vsub.f32 %v39, %v471
    %473 = vmatpush1.msra.mxu0 %v472
    %474 = vmatprep.subr.mxu0 0.0
    %v475 = vand.u32 %v40, 4294901760
    %v476 = vsub.f32 %v40, %v475
    %477 = vmatpush1.msra.mxu0 %v476
    %478 = vmatprep.subr.mxu0 0.0
    %v479 = vand.u32 %v41, 4294901760
    %v480 = vsub.f32 %v41, %v479
    %481 = vmatpush1.msra.mxu0 %v480
    %482 = vmatprep.subr.mxu0 0.0
    %v483 = vand.u32 %v42, 4294901760
    %v484 = vsub.f32 %v42, %v483
    %485 = vmatpush1.msra.mxu0 %v484
    %486 = vmatprep.subr.mxu0 0.0
    %v487 = vand.u32 %v43, 4294901760
    %v488 = vsub.f32 %v43, %v487
    %489 = vmatpush1.msra.mxu0 %v488
    %490 = vmatprep.subr.mxu0 0.0
    %v491 = vand.u32 %v44, 4294901760
    %v492 = vsub.f32 %v44, %v491
    %493 = vmatpush1.msra.mxu0 %v492
    %494 = vmatprep.subr.mxu0 0.0
    %v495 = vand.u32 %v45, 4294901760
    %v496 = vsub.f32 %v45, %v495
    %497 = vmatpush1.msra.mxu0 %v496
    %498 = vmatprep.subr.mxu0 0.0
    %v499 = vand.u32 %v46, 4294901760
    %v500 = vsub.f32 %v46, %v499
    %501 = vmatpush1.msra.mxu0 %v500
    %502 = vmatprep.subr.mxu0 0.0
    %v503 = vand.u32 %v47, 4294901760
    %v504 = vsub.f32 %v47, %v503
    %505 = vmatpush1.msra.mxu0 %v504
    %506 = vmatprep.subr.mxu0 0.0
    %v507 = vand.u32 %v48, 4294901760
    %v508 = vsub.f32 %v48, %v507
    %509 = vmatpush1.msra.mxu0 %v508
    %510 = vmatprep.subr.mxu0 0.0
    %v511 = vand.u32 %v49, 4294901760
    %v512 = vsub.f32 %v49, %v511
    %513 = vmatpush1.msra.mxu0 %v512
    %514 = vmatprep.subr.mxu0 0.0
    %v515 = vand.u32 %v50, 4294901760
    %v516 = vsub.f32 %v50, %v515
    %517 = vmatpush1.msra.mxu0 %v516
    %518 = vmatprep.subr.mxu0 0.0
    %v519 = vand.u32 %v51, 4294901760
    %v520 = vsub.f32 %v51, %v519
    %521 = vmatpush1.msra.mxu0 %v520
    %522 = vmatprep.subr.mxu0 0.0
    %v523 = vand.u32 %v52, 4294901760
    %v524 = vsub.f32 %v52, %v523
    %525 = vmatpush1.msra.mxu0 %v524
    %526 = vmatprep.subr.mxu0 0.0
    %v527 = vand.u32 %v53, 4294901760
    %v528 = vsub.f32 %v53, %v527
    %529 = vmatpush1.msra.mxu0 %v528
    %530 = vmatprep.subr.mxu0 0.0
    %v531 = vand.u32 %v54, 4294901760
    %v532 = vsub.f32 %v54, %v531
    %533 = vmatpush1.msra.mxu0 %v532
    %v534 = vand.u32 %v22, 4294901760
    %v535 = vsub.f32 %v22, %v534
    %536 = vmatprep.mubr.f32.mxu0 %v535
    %v537 = vand.u32 %v21, 4294901760
    %v538 = vsub.f32 %v21, %v537
    %539 = vmatmul.mubr.f32.gmra.mrb[0].mxu0 %v538
    %v540 = vpop.f32.mrb[0].mxu0
    %v541 = vadd.f32 %v403, %v540
    %v542 = vpop.f32.mrb[0].mxu0
    %543 = vdwg.mxu0
    %544 = vmatprep.subr.mxu0 0.0
    %v545 = vand.u32 %v23, 4294901760
    %546 = vmatpush1.msra.mxu0 %v545
    %547 = vmatprep.subr.mxu0 0.0
    %v548 = vand.u32 %v24, 4294901760
    %549 = vmatpush1.msra.mxu0 %v548
    %550 = vmatprep.subr.mxu0 0.0
    %v551 = vand.u32 %v25, 4294901760
    %552 = vmatpush1.msra.mxu0 %v551
    %553 = vmatprep.subr.mxu0 0.0
    %v554 = vand.u32 %v26, 4294901760
    %555 = vmatpush1.msra.mxu0 %v554
    %556 = vmatprep.subr.mxu0 0.0
    %v557 = vand.u32 %v27, 4294901760
    %558 = vmatpush1.msra.mxu0 %v557
    %559 = vmatprep.subr.mxu0 0.0
    %v560 = vand.u32 %v28, 4294901760
    %561 = vmatpush1.msra.mxu0 %v560
    %562 = vmatprep.subr.mxu0 0.0
    %v563 = vand.u32 %v29, 4294901760
    %564 = vmatpush1.msra.mxu0 %v563
    %565 = vmatprep.subr.mxu0 0.0
    %v566 = vand.u32 %v30, 4294901760
    %567 = vmatpush1.msra.mxu0 %v566
    %568 = vmatprep.subr.mxu0 0.0
    %v569 = vand.u32 %v31, 4294901760
    %570 = vmatpush1.msra.mxu0 %v569
    %571 = vmatprep.subr.mxu0 0.0
    %v572 = vand.u32 %v32, 4294901760
    %573 = vmatpush1.msra.mxu0 %v572
    %574 = vmatprep.subr.mxu0 0.0
    %v575 = vand.u32 %v33, 4294901760
    %576 = vmatpush1.msra.mxu0 %v575
    %577 = vmatprep.subr.mxu0 0.0
    %v578 = vand.u32 %v34, 4294901760
    %579 = vmatpush1.msra.mxu0 %v578
    %580 = vmatprep.subr.mxu0 0.0
    %v581 = vand.u32 %v35, 4294901760
    %582 = vmatpush1.msra.mxu0 %v581
    %583 = vmatprep.subr.mxu0 0.0
    %v584 = vand.u32 %v36, 4294901760
    %585 = vmatpush1.msra.mxu0 %v584
    %586 = vmatprep.subr.mxu0 0.0
    %v587 = vand.u32 %v37, 4294901760
    %588 = vmatpush1.msra.mxu0 %v587
    %589 = vmatprep.subr.mxu0 0.0
    %v590 = vand.u32 %v38, 4294901760
    %591 = vmatpush1.msra.mxu0 %v590
    %592 = vmatprep.subr.mxu0 0.0
    %v593 = vand.u32 %v39, 4294901760
    %594 = vmatpush1.msra.mxu0 %v593
    %595 = vmatprep.subr.mxu0 0.0
    %v596 = vand.u32 %v40, 4294901760
    %597 = vmatpush1.msra.mxu0 %v596
    %598 = vmatprep.subr.mxu0 0.0
    %v599 = vand.u32 %v41, 4294901760
    %600 = vmatpush1.msra.mxu0 %v599
    %601 = vmatprep.subr.mxu0 0.0
    %v602 = vand.u32 %v42, 4294901760
    %603 = vmatpush1.msra.mxu0 %v602
    %604 = vmatprep.subr.mxu0 0.0
    %v605 = vand.u32 %v43, 4294901760
    %606 = vmatpush1.msra.mxu0 %v605
    %607 = vmatprep.subr.mxu0 0.0
    %v608 = vand.u32 %v44, 4294901760
    %609 = vmatpush1.msra.mxu0 %v608
    %610 = vmatprep.subr.mxu0 0.0
    %v611 = vand.u32 %v45, 4294901760
    %612 = vmatpush1.msra.mxu0 %v611
    %613 = vmatprep.subr.mxu0 0.0
    %v614 = vand.u32 %v46, 4294901760
    %615 = vmatpush1.msra.mxu0 %v614
    %616 = vmatprep.subr.mxu0 0.0
    %v617 = vand.u32 %v47, 4294901760
    %618 = vmatpush1.msra.mxu0 %v617
    %619 = vmatprep.subr.mxu0 0.0
    %v620 = vand.u32 %v48, 4294901760
    %621 = vmatpush1.msra.mxu0 %v620
    %622 = vmatprep.subr.mxu0 0.0
    %v623 = vand.u32 %v49, 4294901760
    %624 = vmatpush1.msra.mxu0 %v623
    %625 = vmatprep.subr.mxu0 0.0
    %v626 = vand.u32 %v50, 4294901760
    %627 = vmatpush1.msra.mxu0 %v626
    %628 = vmatprep.subr.mxu0 0.0
    %v629 = vand.u32 %v51, 4294901760
    %630 = vmatpush1.msra.mxu0 %v629
    %631 = vmatprep.subr.mxu0 0.0
    %v632 = vand.u32 %v52, 4294901760
    %633 = vmatpush1.msra.mxu0 %v632
    %634 = vmatprep.subr.mxu0 0.0
    %v635 = vand.u32 %v53, 4294901760
    %636 = vmatpush1.msra.mxu0 %v635
    %637 = vmatprep.subr.mxu0 0.0
    %v638 = vand.u32 %v54, 4294901760
    %639 = vmatpush1.msra.mxu0 %v638
    %v640 = vand.u32 %v22, 4294901760
    %v641 = vsub.f32 %v22, %v640
    %v642 = vand.u32 %v641, 4294901760
    %643 = vmatprep.mubr.f32.mxu0 %v642
    %v644 = vand.u32 %v21, 4294901760
    %v645 = vsub.f32 %v21, %v644
    %v646 = vand.u32 %v645, 4294901760
    %647 = vmatmul.mubr.f32.gmra.mrb[0].mxu0 %v646
    %v648 = vpop.f32.mrb[0].mxu0
    %v649 = vadd.f32 %v541, %v648
    %v650 = vpop.f32.mrb[0].mxu0
    %651 = vdwg.mxu0
    %652 = vmatprep.subr.mxu0 0.0
    %v653 = vand.u32 %v23, 4294901760
    %v654 = vsub.f32 %v23, %v653
    %v655 = vand.u32 %v654, 4294901760
    %656 = vmatpush1.msra.mxu0 %v655
    %657 = vmatprep.subr.mxu0 0.0
    %v658 = vand.u32 %v24, 4294901760
    %v659 = vsub.f32 %v24, %v658
    %v660 = vand.u32 %v659, 4294901760
    %661 = vmatpush1.msra.mxu0 %v660
    %662 = vmatprep.subr.mxu0 0.0
    %v663 = vand.u32 %v25, 4294901760
    %v664 = vsub.f32 %v25, %v663
    %v665 = vand.u32 %v664, 4294901760
    %666 = vmatpush1.msra.mxu0 %v665
    %667 = vmatprep.subr.mxu0 0.0
    %v668 = vand.u32 %v26, 4294901760
    %v669 = vsub.f32 %v26, %v668
    %v670 = vand.u32 %v669, 4294901760
    %671 = vmatpush1.msra.mxu0 %v670
    %672 = vmatprep.subr.mxu0 0.0
    %v673 = vand.u32 %v27, 4294901760
    %v674 = vsub.f32 %v27, %v673
    %v675 = vand.u32 %v674, 4294901760
    %676 = vmatpush1.msra.mxu0 %v675
    %677 = vmatprep.subr.mxu0 0.0
    %v678 = vand.u32 %v28, 4294901760
    %v679 = vsub.f32 %v28, %v678
    %v680 = vand.u32 %v679, 4294901760
    %681 = vmatpush1.msra.mxu0 %v680
    %682 = vmatprep.subr.mxu0 0.0
    %v683 = vand.u32 %v29, 4294901760
    %v684 = vsub.f32 %v29, %v683
    %v685 = vand.u32 %v684, 4294901760
    %686 = vmatpush1.msra.mxu0 %v685
    %687 = vmatprep.subr.mxu0 0.0
    %v688 = vand.u32 %v30, 4294901760
    %v689 = vsub.f32 %v30, %v688
    %v690 = vand.u32 %v689, 4294901760
    %691 = vmatpush1.msra.mxu0 %v690
    %692 = vmatprep.subr.mxu0 0.0
    %v693 = vand.u32 %v31, 4294901760
    %v694 = vsub.f32 %v31, %v693
    %v695 = vand.u32 %v694, 4294901760
    %696 = vmatpush1.msra.mxu0 %v695
    %697 = vmatprep.subr.mxu0 0.0
    %v698 = vand.u32 %v32, 4294901760
    %v699 = vsub.f32 %v32, %v698
    %v700 = vand.u32 %v699, 4294901760
    %701 = vmatpush1.msra.mxu0 %v700
    %702 = vmatprep.subr.mxu0 0.0
    %v703 = vand.u32 %v33, 4294901760
    %v704 = vsub.f32 %v33, %v703
    %v705 = vand.u32 %v704, 4294901760
    %706 = vmatpush1.msra.mxu0 %v705
    %707 = vmatprep.subr.mxu0 0.0
    %v708 = vand.u32 %v34, 4294901760
    %v709 = vsub.f32 %v34, %v708
    %v710 = vand.u32 %v709, 4294901760
    %711 = vmatpush1.msra.mxu0 %v710
    %712 = vmatprep.subr.mxu0 0.0
    %v713 = vand.u32 %v35, 4294901760
    %v714 = vsub.f32 %v35, %v713
    %v715 = vand.u32 %v714, 4294901760
    %716 = vmatpush1.msra.mxu0 %v715
    %717 = vmatprep.subr.mxu0 0.0
    %v718 = vand.u32 %v36, 4294901760
    %v719 = vsub.f32 %v36, %v718
    %v720 = vand.u32 %v719, 4294901760
    %721 = vmatpush1.msra.mxu0 %v720
    %722 = vmatprep.subr.mxu0 0.0
    %v723 = vand.u32 %v37, 4294901760
    %v724 = vsub.f32 %v37, %v723
    %v725 = vand.u32 %v724, 4294901760
    %726 = vmatpush1.msra.mxu0 %v725
    %727 = vmatprep.subr.mxu0 0.0
    %v728 = vand.u32 %v38, 4294901760
    %v729 = vsub.f32 %v38, %v728
    %v730 = vand.u32 %v729, 4294901760
    %731 = vmatpush1.msra.mxu0 %v730
    %732 = vmatprep.subr.mxu0 0.0
    %v733 = vand.u32 %v39, 4294901760
    %v734 = vsub.f32 %v39, %v733
    %v735 = vand.u32 %v734, 4294901760
    %736 = vmatpush1.msra.mxu0 %v735
    %737 = vmatprep.subr.mxu0 0.0
    %v738 = vand.u32 %v40, 4294901760
    %v739 = vsub.f32 %v40, %v738
    %v740 = vand.u32 %v739, 4294901760
    %741 = vmatpush1.msra.mxu0 %v740
    %742 = vmatprep.subr.mxu0 0.0
    %v743 = vand.u32 %v41, 4294901760
    %v744 = vsub.f32 %v41, %v743
    %v745 = vand.u32 %v744, 4294901760
    %746 = vmatpush1.msra.mxu0 %v745
    %747 = vmatprep.subr.mxu0 0.0
    %v748 = vand.u32 %v42, 4294901760
    %v749 = vsub.f32 %v42, %v748
    %v750 = vand.u32 %v749, 4294901760
    %751 = vmatpush1.msra.mxu0 %v750
    %752 = vmatprep.subr.mxu0 0.0
    %v753 = vand.u32 %v43, 4294901760
    %v754 = vsub.f32 %v43, %v753
    %v755 = vand.u32 %v754, 4294901760
    %756 = vmatpush1.msra.mxu0 %v755
    %757 = vmatprep.subr.mxu0 0.0
    %v758 = vand.u32 %v44, 4294901760
    %v759 = vsub.f32 %v44, %v758
    %v760 = vand.u32 %v759, 4294901760
    %761 = vmatpush1.msra.mxu0 %v760
    %762 = vmatprep.subr.mxu0 0.0
    %v763 = vand.u32 %v45, 4294901760
    %v764 = vsub.f32 %v45, %v763
    %v765 = vand.u32 %v764, 4294901760
    %766 = vmatpush1.msra.mxu0 %v765
    %767 = vmatprep.subr.mxu0 0.0
    %v768 = vand.u32 %v46, 4294901760
    %v769 = vsub.f32 %v46, %v768
    %v770 = vand.u32 %v769, 4294901760
    %771 = vmatpush1.msra.mxu0 %v770
    %772 = vmatprep.subr.mxu0 0.0
    %v773 = vand.u32 %v47, 4294901760
    %v774 = vsub.f32 %v47, %v773
    %v775 = vand.u32 %v774, 4294901760
    %776 = vmatpush1.msra.mxu0 %v775
    %777 = vmatprep.subr.mxu0 0.0
    %v778 = vand.u32 %v48, 4294901760
    %v779 = vsub.f32 %v48, %v778
    %v780 = vand.u32 %v779, 4294901760
    %781 = vmatpush1.msra.mxu0 %v780
    %782 = vmatprep.subr.mxu0 0.0
    %v783 = vand.u32 %v49, 4294901760
    %v784 = vsub.f32 %v49, %v783
    %v785 = vand.u32 %v784, 4294901760
    %786 = vmatpush1.msra.mxu0 %v785
    %787 = vmatprep.subr.mxu0 0.0
    %v788 = vand.u32 %v50, 4294901760
    %v789 = vsub.f32 %v50, %v788
    %v790 = vand.u32 %v789, 4294901760
    %791 = vmatpush1.msra.mxu0 %v790
    %792 = vmatprep.subr.mxu0 0.0
    %v793 = vand.u32 %v51, 4294901760
    %v794 = vsub.f32 %v51, %v793
    %v795 = vand.u32 %v794, 4294901760
    %796 = vmatpush1.msra.mxu0 %v795
    %797 = vmatprep.subr.mxu0 0.0
    %v798 = vand.u32 %v52, 4294901760
    %v799 = vsub.f32 %v52, %v798
    %v800 = vand.u32 %v799, 4294901760
    %801 = vmatpush1.msra.mxu0 %v800
    %802 = vmatprep.subr.mxu0 0.0
    %v803 = vand.u32 %v53, 4294901760
    %v804 = vsub.f32 %v53, %v803
    %v805 = vand.u32 %v804, 4294901760
    %806 = vmatpush1.msra.mxu0 %v805
    %807 = vmatprep.subr.mxu0 0.0
    %v808 = vand.u32 %v54, 4294901760
    %v809 = vsub.f32 %v54, %v808
    %v810 = vand.u32 %v809, 4294901760
    %811 = vmatpush1.msra.mxu0 %v810
    %v812 = vand.u32 %v22, 4294901760
    %813 = vmatprep.mubr.f32.mxu0 %v812
    %v814 = vand.u32 %v21, 4294901760
    %815 = vmatmul.mubr.f32.gmra.mrb[0].mxu0 %v814
    %v816 = vpop.f32.mrb[0].mxu0
    %v817 = vadd.f32 %v649, %v816
    %v818 = vpop.f32.mrb[0].mxu0
    %819 = vdwg.mxu0
    %820 = vmatprep.subr.mxu0 0.0
    %v821 = vand.u32 %v23, 4294901760
    %822 = vmatpush1.msra.mxu0 %v821
    %823 = vmatprep.subr.mxu0 0.0
    %v824 = vand.u32 %v24, 4294901760
    %825 = vmatpush1.msra.mxu0 %v824
    %826 = vmatprep.subr.mxu0 0.0
    %v827 = vand.u32 %v25, 4294901760
    %828 = vmatpush1.msra.mxu0 %v827
    %829 = vmatprep.subr.mxu0 0.0
    %v830 = vand.u32 %v26, 4294901760
    %831 = vmatpush1.msra.mxu0 %v830
    %832 = vmatprep.subr.mxu0 0.0
    %v833 = vand.u32 %v27, 4294901760
    %834 = vmatpush1.msra.mxu0 %v833
    %835 = vmatprep.subr.mxu0 0.0
    %v836 = vand.u32 %v28, 4294901760
    %837 = vmatpush1.msra.mxu0 %v836
    %838 = vmatprep.subr.mxu0 0.0
    %v839 = vand.u32 %v29, 4294901760
    %840 = vmatpush1.msra.mxu0 %v839
    %841 = vmatprep.subr.mxu0 0.0
    %v842 = vand.u32 %v30, 4294901760
    %843 = vmatpush1.msra.mxu0 %v842
    %844 = vmatprep.subr.mxu0 0.0
    %v845 = vand.u32 %v31, 4294901760
    %846 = vmatpush1.msra.mxu0 %v845
    %847 = vmatprep.subr.mxu0 0.0
    %v848 = vand.u32 %v32, 4294901760
    %849 = vmatpush1.msra.mxu0 %v848
    %850 = vmatprep.subr.mxu0 0.0
    %v851 = vand.u32 %v33, 4294901760
    %852 = vmatpush1.msra.mxu0 %v851
    %853 = vmatprep.subr.mxu0 0.0
    %v854 = vand.u32 %v34, 4294901760
    %855 = vmatpush1.msra.mxu0 %v854
    %856 = vmatprep.subr.mxu0 0.0
    %v857 = vand.u32 %v35, 4294901760
    %858 = vmatpush1.msra.mxu0 %v857
    %859 = vmatprep.subr.mxu0 0.0
    %v860 = vand.u32 %v36, 4294901760
    %861 = vmatpush1.msra.mxu0 %v860
    %862 = vmatprep.subr.mxu0 0.0
    %v863 = vand.u32 %v37, 4294901760
    %864 = vmatpush1.msra.mxu0 %v863
    %865 = vmatprep.subr.mxu0 0.0
    %v866 = vand.u32 %v38, 4294901760
    %867 = vmatpush1.msra.mxu0 %v866
    %868 = vmatprep.subr.mxu0 0.0
    %v869 = vand.u32 %v39, 4294901760
    %870 = vmatpush1.msra.mxu0 %v869
    %871 = vmatprep.subr.mxu0 0.0
    %v872 = vand.u32 %v40, 4294901760
    %873 = vmatpush1.msra.mxu0 %v872
    %874 = vmatprep.subr.mxu0 0.0
    %v875 = vand.u32 %v41, 4294901760
    %876 = vmatpush1.msra.mxu0 %v875
    %877 = vmatprep.subr.mxu0 0.0
    %v878 = vand.u32 %v42, 4294901760
    %879 = vmatpush1.msra.mxu0 %v878
    %880 = vmatprep.subr.mxu0 0.0
    %v881 = vand.u32 %v43, 4294901760
    %882 = vmatpush1.msra.mxu0 %v881
    %883 = vmatprep.subr.mxu0 0.0
    %v884 = vand.u32 %v44, 4294901760
    %885 = vmatpush1.msra.mxu0 %v884
    %886 = vmatprep.subr.mxu0 0.0
    %v887 = vand.u32 %v45, 4294901760
    %888 = vmatpush1.msra.mxu0 %v887
    %889 = vmatprep.subr.mxu0 0.0
    %v890 = vand.u32 %v46, 4294901760
    %891 = vmatpush1.msra.mxu0 %v890
    %892 = vmatprep.subr.mxu0 0.0
    %v893 = vand.u32 %v47, 4294901760
    %894 = vmatpush1.msra.mxu0 %v893
    %895 = vmatprep.subr.mxu0 0.0
    %v896 = vand.u32 %v48, 4294901760
    %897 = vmatpush1.msra.mxu0 %v896
    %898 = vmatprep.subr.mxu0 0.0
    %v899 = vand.u32 %v49, 4294901760
    %900 = vmatpush1.msra.mxu0 %v899
    %901 = vmatprep.subr.mxu0 0.0
    %v902 = vand.u32 %v50, 4294901760
    %903 = vmatpush1.msra.mxu0 %v902
    %904 = vmatprep.subr.mxu0 0.0
    %v905 = vand.u32 %v51, 4294901760
    %906 = vmatpush1.msra.mxu0 %v905
    %907 = vmatprep.subr.mxu0 0.0
    %v908 = vand.u32 %v52, 4294901760
    %909 = vmatpush1.msra.mxu0 %v908
    %910 = vmatprep.subr.mxu0 0.0
    %v911 = vand.u32 %v53, 4294901760
    %912 = vmatpush1.msra.mxu0 %v911
    %913 = vmatprep.subr.mxu0 0.0
    %v914 = vand.u32 %v54, 4294901760
    %915 = vmatpush1.msra.mxu0 %v914
    %v916 = vand.u32 %v22, 4294901760
    %917 = vmatprep.mubr.f32.mxu0 %v916
    %v918 = vand.u32 %v21, 4294901760
    %919 = vmatmul.mubr.f32.gmra.mrb[0].mxu0 %v918
    %v920 = vpop.f32.mrb[0].mxu0
    %v921 = vadd.f32 %v817, %v920
    %v922 = vpop.f32.mrb[0].mxu0
    %923 = vdwg.mxu0
    %v924 = vmax.f32 %v921, 0.0
    %v925 = vld [vmem:[%s3] sm:$0xff]
    %v926 = vld [vmem:[%s3 + $0x8] sm:$0xff]
    %v927 = vld [vmem:[%s3 + $0x10] sm:$0xff]
    %v928 = vld [vmem:[%s3 + $0x18] sm:$0xff]
    %v929 = vld [vmem:[%s4] sm:$0x1]
    %v931 = vlaneseq
    %v932 = vshrl.u32 %v931, 7
    %v933 = vsub.s32 0, %v932
    %v934 = vrot.slane %v929, %v933
    %vm936 = vcmask 261120
    %v938 = vsel %vm936, %v924, 0
    %940 = vmatprep.subr.mxu0 0.0
    %v941 = vand.u32 %v925, 4294901760
    %942 = vmatpush1.msra.mxu0 %v941
    %943 = vmatprep.subr.mxu0 0.0
    %v944 = vand.u32 %v926, 4294901760
    %945 = vmatpush1.msra.mxu0 %v944
    %946 = vmatprep.subr.mxu0 0.0
    %v947 = vand.u32 %v927, 4294901760
    %948 = vmatpush1.msra.mxu0 %v947
    %949 = vmatprep.subr.mxu0 0.0
    %v950 = vand.u32 %v928, 4294901760
    %951 = vmatpush1.msra.mxu0 %v950
    %952 = vmatprep.subr.mxu0 0.0
    %953 = vmatpush1.msra.mxu0 0.0
    %954 = vmatprep.subr.mxu0 0.0
    %955 = vmatpush1.msra.mxu0 0.0
    %956 = vmatprep.subr.mxu0 0.0
    %957 = vmatpush1.msra.mxu0 0.0
    %958 = vmatprep.subr.mxu0 0.0
    %959 = vmatpush1.msra.mxu0 0.0
    %960 = vmatprep.subr.mxu0 0.0
    %961 = vmatpush1.msra.mxu0 0.0
    %962 = vmatprep.subr.mxu0 0.0
    %963 = vmatpush1.msra.mxu0 0.0
    %964 = vmatprep.subr.mxu0 0.0
    %965 = vmatpush1.msra.mxu0 0.0
    %966 = vmatprep.subr.mxu0 0.0
    %967 = vmatpush1.msra.mxu0 0.0
    %968 = vmatprep.subr.mxu0 0.0
    %969 = vmatpush1.msra.mxu0 0.0
    %970 = vmatprep.subr.mxu0 0.0
    %971 = vmatpush1.msra.mxu0 0.0
    %972 = vmatprep.subr.mxu0 0.0
    %973 = vmatpush1.msra.mxu0 0.0
    %974 = vmatprep.subr.mxu0 0.0
    %975 = vmatpush1.msra.mxu0 0.0
    %976 = vmatprep.subr.mxu0 0.0
    %977 = vmatpush1.msra.mxu0 0.0
    %978 = vmatprep.subr.mxu0 0.0
    %979 = vmatpush1.msra.mxu0 0.0
    %980 = vmatprep.subr.mxu0 0.0
    %981 = vmatpush1.msra.mxu0 0.0
    %982 = vmatprep.subr.mxu0 0.0
    %983 = vmatpush1.msra.mxu0 0.0
    %984 = vmatprep.subr.mxu0 0.0
    %985 = vmatpush1.msra.mxu0 0.0
    %986 = vmatprep.subr.mxu0 0.0
    %987 = vmatpush1.msra.mxu0 0.0
    %988 = vmatprep.subr.mxu0 0.0
    %989 = vmatpush1.msra.mxu0 0.0
    %990 = vmatprep.subr.mxu0 0.0
    %991 = vmatpush1.msra.mxu0 0.0
    %992 = vmatprep.subr.mxu0 0.0
    %993 = vmatpush1.msra.mxu0 0.0
    %994 = vmatprep.subr.mxu0 0.0
    %995 = vmatpush1.msra.mxu0 0.0
    %996 = vmatprep.subr.mxu0 0.0
    %997 = vmatpush1.msra.mxu0 0.0
    %998 = vmatprep.subr.mxu0 0.0
    %999 = vmatpush1.msra.mxu0 0.0
    %1000 = vmatprep.subr.mxu0 0.0
    %1001 = vmatpush1.msra.mxu0 0.0
    %1002 = vmatprep.subr.mxu0 0.0
    %1003 = vmatpush1.msra.mxu0 0.0
    %1004 = vmatprep.subr.mxu0 0.0
    %1005 = vmatpush1.msra.mxu0 0.0
    %1006 = vmatprep.subr.mxu0 0.0
    %1007 = vmatpush1.msra.mxu0 0.0
    %1008 = vmatprep.mubr.f32.mxu0 0.0
    %v1009 = vand.u32 %v938, 4294901760
    %v1010 = vsub.f32 %v938, %v1009
    %v1011 = vand.u32 %v1010, 4294901760
    %v1012 = vsub.f32 %v1010, %v1011
    %v1013 = vand.u32 %v1012, 4294901760
    %1014 = vmatmul.mubr.f32.gmra.mrb[0].mxu0 %v1013
    %v1015 = vpop.f32.mrb[0].mxu0
    %v1016 = vadd.f32 %v934, %v1015
    %v1017 = vpop.f32.mrb[0].mxu0
    %1018 = vdwg.mxu0
    %1019 = vmatprep.subr.mxu0 0.0
    %v1020 = vand.u32 %v925, 4294901760
    %v1021 = vsub.f32 %v925, %v1020
    %v1022 = vand.u32 %v1021, 4294901760
    %v1023 = vsub.f32 %v1021, %v1022
    %v1024 = vand.u32 %v1023, 4294901760
    %1025 = vmatpush1.msra.mxu0 %v1024
    %1026 = vmatprep.subr.mxu0 0.0
    %v1027 = vand.u32 %v926, 4294901760
    %v1028 = vsub.f32 %v926, %v1027
    %v1029 = vand.u32 %v1028, 4294901760
    %v1030 = vsub.f32 %v1028, %v1029
    %v1031 = vand.u32 %v1030, 4294901760
    %1032 = vmatpush1.msra.mxu0 %v1031
    %1033 = vmatprep.subr.mxu0 0.0
    %v1034 = vand.u32 %v927, 4294901760
    %v1035 = vsub.f32 %v927, %v1034
    %v1036 = vand.u32 %v1035, 4294901760
    %v1037 = vsub.f32 %v1035, %v1036
    %v1038 = vand.u32 %v1037, 4294901760
    %1039 = vmatpush1.msra.mxu0 %v1038
    %1040 = vmatprep.subr.mxu0 0.0
    %v1041 = vand.u32 %v928, 4294901760
    %v1042 = vsub.f32 %v928, %v1041
    %v1043 = vand.u32 %v1042, 4294901760
    %v1044 = vsub.f32 %v1042, %v1043
    %v1045 = vand.u32 %v1044, 4294901760
    %1046 = vmatpush1.msra.mxu0 %v1045
    %1047 = vmatprep.subr.mxu0 0.0
    %1048 = vmatpush1.msra.mxu0 0.0
    %1049 = vmatprep.subr.mxu0 0.0
    %1050 = vmatpush1.msra.mxu0 0.0
    %1051 = vmatprep.subr.mxu0 0.0
    %1052 = vmatpush1.msra.mxu0 0.0
    %1053 = vmatprep.subr.mxu0 0.0
    %1054 = vmatpush1.msra.mxu0 0.0
    %1055 = vmatprep.subr.mxu0 0.0
    %1056 = vmatpush1.msra.mxu0 0.0
    %1057 = vmatprep.subr.mxu0 0.0
    %1058 = vmatpush1.msra.mxu0 0.0
    %1059 = vmatprep.subr.mxu0 0.0
    %1060 = vmatpush1.msra.mxu0 0.0
    %1061 = vmatprep.subr.mxu0 0.0
    %1062 = vmatpush1.msra.mxu0 0.0
    %1063 = vmatprep.subr.mxu0 0.0
    %1064 = vmatpush1.msra.mxu0 0.0
    %1065 = vmatprep.subr.mxu0 0.0
    %1066 = vmatpush1.msra.mxu0 0.0
    %1067 = vmatprep.subr.mxu0 0.0
    %1068 = vmatpush1.msra.mxu0 0.0
    %1069 = vmatprep.subr.mxu0 0.0
    %1070 = vmatpush1.msra.mxu0 0.0
    %1071 = vmatprep.subr.mxu0 0.0
    %1072 = vmatpush1.msra.mxu0 0.0
    %1073 = vmatprep.subr.mxu0 0.0
    %1074 = vmatpush1.msra.mxu0 0.0
    %1075 = vmatprep.subr.mxu0 0.0
    %1076 = vmatpush1.msra.mxu0 0.0
    %1077 = vmatprep.subr.mxu0 0.0
    %1078 = vmatpush1.msra.mxu0 0.0
    %1079 = vmatprep.subr.mxu0 0.0
    %1080 = vmatpush1.msra.mxu0 0.0
    %1081 = vmatprep.subr.mxu0 0.0
    %1082 = vmatpush1.msra.mxu0 0.0
    %1083 = vmatprep.subr.mxu0 0.0
    %1084 = vmatpush1.msra.mxu0 0.0
    %1085 = vmatprep.subr.mxu0 0.0
    %1086 = vmatpush1.msra.mxu0 0.0
    %1087 = vmatprep.subr.mxu0 0.0
    %1088 = vmatpush1.msra.mxu0 0.0
    %1089 = vmatprep.subr.mxu0 0.0
    %1090 = vmatpush1.msra.mxu0 0.0
    %1091 = vmatprep.subr.mxu0 0.0
    %1092 = vmatpush1.msra.mxu0 0.0
    %1093 = vmatprep.subr.mxu0 0.0
    %1094 = vmatpush1.msra.mxu0 0.0
    %1095 = vmatprep.subr.mxu0 0.0
    %1096 = vmatpush1.msra.mxu0 0.0
    %1097 = vmatprep.subr.mxu0 0.0
    %1098 = vmatpush1.msra.mxu0 0.0
    %1099 = vmatprep.subr.mxu0 0.0
    %1100 = vmatpush1.msra.mxu0 0.0
    %1101 = vmatprep.subr.mxu0 0.0
    %1102 = vmatpush1.msra.mxu0 0.0
    %1103 = vmatprep.mubr.f32.mxu0 0.0
    %v1104 = vand.u32 %v938, 4294901760
    %1105 = vmatmul.mubr.f32.gmra.mrb[0].mxu0 %v1104
    %v1106 = vpop.f32.mrb[0].mxu0
    %v1107 = vadd.f32 %v1016, %v1106
    %v1108 = vpop.f32.mrb[0].mxu0
    %1109 = vdwg.mxu0
    %1110 = vmatprep.subr.mxu0 0.0
    %v1111 = vand.u32 %v925, 4294901760
    %v1112 = vsub.f32 %v925, %v1111
    %1113 = vmatpush1.msra.mxu0 %v1112
    %1114 = vmatprep.subr.mxu0 0.0
    %v1115 = vand.u32 %v926, 4294901760
    %v1116 = vsub.f32 %v926, %v1115
    %1117 = vmatpush1.msra.mxu0 %v1116
    %1118 = vmatprep.subr.mxu0 0.0
    %v1119 = vand.u32 %v927, 4294901760
    %v1120 = vsub.f32 %v927, %v1119
    %1121 = vmatpush1.msra.mxu0 %v1120
    %1122 = vmatprep.subr.mxu0 0.0
    %v1123 = vand.u32 %v928, 4294901760
    %v1124 = vsub.f32 %v928, %v1123
    %1125 = vmatpush1.msra.mxu0 %v1124
    %1126 = vmatprep.subr.mxu0 0.0
    %1127 = vmatpush1.msra.mxu0 0.0
    %1128 = vmatprep.subr.mxu0 0.0
    %1129 = vmatpush1.msra.mxu0 0.0
    %1130 = vmatprep.subr.mxu0 0.0
    %1131 = vmatpush1.msra.mxu0 0.0
    %1132 = vmatprep.subr.mxu0 0.0
    %1133 = vmatpush1.msra.mxu0 0.0
    %1134 = vmatprep.subr.mxu0 0.0
    %1135 = vmatpush1.msra.mxu0 0.0
    %1136 = vmatprep.subr.mxu0 0.0
    %1137 = vmatpush1.msra.mxu0 0.0
    %1138 = vmatprep.subr.mxu0 0.0
    %1139 = vmatpush1.msra.mxu0 0.0
    %1140 = vmatprep.subr.mxu0 0.0
    %1141 = vmatpush1.msra.mxu0 0.0
    %1142 = vmatprep.subr.mxu0 0.0
    %1143 = vmatpush1.msra.mxu0 0.0
    %1144 = vmatprep.subr.mxu0 0.0
    %1145 = vmatpush1.msra.mxu0 0.0
    %1146 = vmatprep.subr.mxu0 0.0
    %1147 = vmatpush1.msra.mxu0 0.0
    %1148 = vmatprep.subr.mxu0 0.0
    %1149 = vmatpush1.msra.mxu0 0.0
    %1150 = vmatprep.subr.mxu0 0.0
    %1151 = vmatpush1.msra.mxu0 0.0
    %1152 = vmatprep.subr.mxu0 0.0
    %1153 = vmatpush1.msra.mxu0 0.0
    %1154 = vmatprep.subr.mxu0 0.0
    %1155 = vmatpush1.msra.mxu0 0.0
    %1156 = vmatprep.subr.mxu0 0.0
    %1157 = vmatpush1.msra.mxu0 0.0
    %1158 = vmatprep.subr.mxu0 0.0
    %1159 = vmatpush1.msra.mxu0 0.0
    %1160 = vmatprep.subr.mxu0 0.0
    %1161 = vmatpush1.msra.mxu0 0.0
    %1162 = vmatprep.subr.mxu0 0.0
    %1163 = vmatpush1.msra.mxu0 0.0
    %1164 = vmatprep.subr.mxu0 0.0
    %1165 = vmatpush1.msra.mxu0 0.0
    %1166 = vmatprep.subr.mxu0 0.0
    %1167 = vmatpush1.msra.mxu0 0.0
    %1168 = vmatprep.subr.mxu0 0.0
    %1169 = vmatpush1.msra.mxu0 0.0
    %1170 = vmatprep.subr.mxu0 0.0
    %1171 = vmatpush1.msra.mxu0 0.0
    %1172 = vmatprep.subr.mxu0 0.0
    %1173 = vmatpush1.msra.mxu0 0.0
    %1174 = vmatprep.subr.mxu0 0.0
    %1175 = vmatpush1.msra.mxu0 0.0
    %1176 = vmatprep.subr.mxu0 0.0
    %1177 = vmatpush1.msra.mxu0 0.0
    %1178 = vmatprep.subr.mxu0 0.0
    %1179 = vmatpush1.msra.mxu0 0.0
    %1180 = vmatprep.subr.mxu0 0.0
    %1181 = vmatpush1.msra.mxu0 0.0
    %1182 = vmatprep.mubr.f32.mxu0 0.0
    %v1183 = vand.u32 %v938, 4294901760
    %v1184 = vsub.f32 %v938, %v1183
    %1185 = vmatmul.mubr.f32.gmra.mrb[0].mxu0 %v1184
    %v1186 = vpop.f32.mrb[0].mxu0
    %v1187 = vadd.f32 %v1107, %v1186
    %v1188 = vpop.f32.mrb[0].mxu0
    %1189 = vdwg.mxu0
    %1190 = vmatprep.subr.mxu0 0.0
    %v1191 = vand.u32 %v925, 4294901760
    %1192 = vmatpush1.msra.mxu0 %v1191
    %1193 = vmatprep.subr.mxu0 0.0
    %v1194 = vand.u32 %v926, 4294901760
    %1195 = vmatpush1.msra.mxu0 %v1194
    %1196 = vmatprep.subr.mxu0 0.0
    %v1197 = vand.u32 %v927, 4294901760
    %1198 = vmatpush1.msra.mxu0 %v1197
    %1199 = vmatprep.subr.mxu0 0.0
    %v1200 = vand.u32 %v928, 4294901760
    %1201 = vmatpush1.msra.mxu0 %v1200
    %1202 = vmatprep.subr.mxu0 0.0
    %1203 = vmatpush1.msra.mxu0 0.0
    %1204 = vmatprep.subr.mxu0 0.0
    %1205 = vmatpush1.msra.mxu0 0.0
    %1206 = vmatprep.subr.mxu0 0.0
    %1207 = vmatpush1.msra.mxu0 0.0
    %1208 = vmatprep.subr.mxu0 0.0
    %1209 = vmatpush1.msra.mxu0 0.0
    %1210 = vmatprep.subr.mxu0 0.0
    %1211 = vmatpush1.msra.mxu0 0.0
    %1212 = vmatprep.subr.mxu0 0.0
    %1213 = vmatpush1.msra.mxu0 0.0
    %1214 = vmatprep.subr.mxu0 0.0
    %1215 = vmatpush1.msra.mxu0 0.0
    %1216 = vmatprep.subr.mxu0 0.0
    %1217 = vmatpush1.msra.mxu0 0.0
    %1218 = vmatprep.subr.mxu0 0.0
    %1219 = vmatpush1.msra.mxu0 0.0
    %1220 = vmatprep.subr.mxu0 0.0
    %1221 = vmatpush1.msra.mxu0 0.0
    %1222 = vmatprep.subr.mxu0 0.0
    %1223 = vmatpush1.msra.mxu0 0.0
    %1224 = vmatprep.subr.mxu0 0.0
    %1225 = vmatpush1.msra.mxu0 0.0
    %1226 = vmatprep.subr.mxu0 0.0
    %1227 = vmatpush1.msra.mxu0 0.0
    %1228 = vmatprep.subr.mxu0 0.0
    %1229 = vmatpush1.msra.mxu0 0.0
    %1230 = vmatprep.subr.mxu0 0.0
    %1231 = vmatpush1.msra.mxu0 0.0
    %1232 = vmatprep.subr.mxu0 0.0
    %1233 = vmatpush1.msra.mxu0 0.0
    %1234 = vmatprep.subr.mxu0 0.0
    %1235 = vmatpush1.msra.mxu0 0.0
    %1236 = vmatprep.subr.mxu0 0.0
    %1237 = vmatpush1.msra.mxu0 0.0
    %1238 = vmatprep.subr.mxu0 0.0
    %1239 = vmatpush1.msra.mxu0 0.0
    %1240 = vmatprep.subr.mxu0 0.0
    %1241 = vmatpush1.msra.mxu0 0.0
    %1242 = vmatprep.subr.mxu0 0.0
    %1243 = vmatpush1.msra.mxu0 0.0
    %1244 = vmatprep.subr.mxu0 0.0
    %1245 = vmatpush1.msra.mxu0 0.0
    %1246 = vmatprep.subr.mxu0 0.0
    %1247 = vmatpush1.msra.mxu0 0.0
    %1248 = vmatprep.subr.mxu0 0.0
    %1249 = vmatpush1.msra.mxu0 0.0
    %1250 = vmatprep.subr.mxu0 0.0
    %1251 = vmatpush1.msra.mxu0 0.0
    %1252 = vmatprep.subr.mxu0 0.0
    %1253 = vmatpush1.msra.mxu0 0.0
    %1254 = vmatprep.subr.mxu0 0.0
    %1255 = vmatpush1.msra.mxu0 0.0
    %1256 = vmatprep.subr.mxu0 0.0
    %1257 = vmatpush1.msra.mxu0 0.0
    %1258 = vmatprep.mubr.f32.mxu0 0.0
    %v1259 = vand.u32 %v938, 4294901760
    %v1260 = vsub.f32 %v938, %v1259
    %v1261 = vand.u32 %v1260, 4294901760
    %1262 = vmatmul.mubr.f32.gmra.mrb[0].mxu0 %v1261
    %v1263 = vpop.f32.mrb[0].mxu0
    %v1264 = vadd.f32 %v1187, %v1263
    %v1265 = vpop.f32.mrb[0].mxu0
    %1266 = vdwg.mxu0
    %1267 = vmatprep.subr.mxu0 0.0
    %v1268 = vand.u32 %v925, 4294901760
    %v1269 = vsub.f32 %v925, %v1268
    %v1270 = vand.u32 %v1269, 4294901760
    %1271 = vmatpush1.msra.mxu0 %v1270
    %1272 = vmatprep.subr.mxu0 0.0
    %v1273 = vand.u32 %v926, 4294901760
    %v1274 = vsub.f32 %v926, %v1273
    %v1275 = vand.u32 %v1274, 4294901760
    %1276 = vmatpush1.msra.mxu0 %v1275
    %1277 = vmatprep.subr.mxu0 0.0
    %v1278 = vand.u32 %v927, 4294901760
    %v1279 = vsub.f32 %v927, %v1278
    %v1280 = vand.u32 %v1279, 4294901760
    %1281 = vmatpush1.msra.mxu0 %v1280
    %1282 = vmatprep.subr.mxu0 0.0
    %v1283 = vand.u32 %v928, 4294901760
    %v1284 = vsub.f32 %v928, %v1283
    %v1285 = vand.u32 %v1284, 4294901760
    %1286 = vmatpush1.msra.mxu0 %v1285
    %1287 = vmatprep.subr.mxu0 0.0
    %1288 = vmatpush1.msra.mxu0 0.0
    %1289 = vmatprep.subr.mxu0 0.0
    %1290 = vmatpush1.msra.mxu0 0.0
    %1291 = vmatprep.subr.mxu0 0.0
    %1292 = vmatpush1.msra.mxu0 0.0
    %1293 = vmatprep.subr.mxu0 0.0
    %1294 = vmatpush1.msra.mxu0 0.0
    %1295 = vmatprep.subr.mxu0 0.0
    %1296 = vmatpush1.msra.mxu0 0.0
    %1297 = vmatprep.subr.mxu0 0.0
    %1298 = vmatpush1.msra.mxu0 0.0
    %1299 = vmatprep.subr.mxu0 0.0
    %1300 = vmatpush1.msra.mxu0 0.0
    %1301 = vmatprep.subr.mxu0 0.0
    %1302 = vmatpush1.msra.mxu0 0.0
    %1303 = vmatprep.subr.mxu0 0.0
    %1304 = vmatpush1.msra.mxu0 0.0
    %1305 = vmatprep.subr.mxu0 0.0
    %1306 = vmatpush1.msra.mxu0 0.0
    %1307 = vmatprep.subr.mxu0 0.0
    %1308 = vmatpush1.msra.mxu0 0.0
    %1309 = vmatprep.subr.mxu0 0.0
    %1310 = vmatpush1.msra.mxu0 0.0
    %1311 = vmatprep.subr.mxu0 0.0
    %1312 = vmatpush1.msra.mxu0 0.0
    %1313 = vmatprep.subr.mxu0 0.0
    %1314 = vmatpush1.msra.mxu0 0.0
    %1315 = vmatprep.subr.mxu0 0.0
    %1316 = vmatpush1.msra.mxu0 0.0
    %1317 = vmatprep.subr.mxu0 0.0
    %1318 = vmatpush1.msra.mxu0 0.0
    %1319 = vmatprep.subr.mxu0 0.0
    %1320 = vmatpush1.msra.mxu0 0.0
    %1321 = vmatprep.subr.mxu0 0.0
    %1322 = vmatpush1.msra.mxu0 0.0
    %1323 = vmatprep.subr.mxu0 0.0
    %1324 = vmatpush1.msra.mxu0 0.0
    %1325 = vmatprep.subr.mxu0 0.0
    %1326 = vmatpush1.msra.mxu0 0.0
    %1327 = vmatprep.subr.mxu0 0.0
    %1328 = vmatpush1.msra.mxu0 0.0
    %1329 = vmatprep.subr.mxu0 0.0
    %1330 = vmatpush1.msra.mxu0 0.0
    %1331 = vmatprep.subr.mxu0 0.0
    %1332 = vmatpush1.msra.mxu0 0.0
    %1333 = vmatprep.subr.mxu0 0.0
    %1334 = vmatpush1.msra.mxu0 0.0
    %1335 = vmatprep.subr.mxu0 0.0
    %1336 = vmatpush1.msra.mxu0 0.0
    %1337 = vmatprep.subr.mxu0 0.0
    %1338 = vmatpush1.msra.mxu0 0.0
    %1339 = vmatprep.subr.mxu0 0.0
    %1340 = vmatpush1.msra.mxu0 0.0
    %1341 = vmatprep.subr.mxu0 0.0
    %1342 = vmatpush1.msra.mxu0 0.0
    %1343 = vmatprep.mubr.f32.mxu0 0.0
    %v1344 = vand.u32 %v938, 4294901760
    %1345 = vmatmul.mubr.f32.gmra.mrb[0].mxu0 %v1344
    %v1346 = vpop.f32.mrb[0].mxu0
    %v1347 = vadd.f32 %v1264, %v1346
    %v1348 = vpop.f32.mrb[0].mxu0
    %1349 = vdwg.mxu0
    %1350 = vmatprep.subr.mxu0 0.0
    %v1351 = vand.u32 %v925, 4294901760
    %1352 = vmatpush1.msra.mxu0 %v1351
    %1353 = vmatprep.subr.mxu0 0.0
    %v1354 = vand.u32 %v926, 4294901760
    %1355 = vmatpush1.msra.mxu0 %v1354
    %1356 = vmatprep.subr.mxu0 0.0
    %v1357 = vand.u32 %v927, 4294901760
    %1358 = vmatpush1.msra.mxu0 %v1357
    %1359 = vmatprep.subr.mxu0 0.0
    %v1360 = vand.u32 %v928, 4294901760
    %1361 = vmatpush1.msra.mxu0 %v1360
    %1362 = vmatprep.subr.mxu0 0.0
    %1363 = vmatpush1.msra.mxu0 0.0
    %1364 = vmatprep.subr.mxu0 0.0
    %1365 = vmatpush1.msra.mxu0 0.0
    %1366 = vmatprep.subr.mxu0 0.0
    %1367 = vmatpush1.msra.mxu0 0.0
    %1368 = vmatprep.subr.mxu0 0.0
    %1369 = vmatpush1.msra.mxu0 0.0
    %1370 = vmatprep.subr.mxu0 0.0
    %1371 = vmatpush1.msra.mxu0 0.0
    %1372 = vmatprep.subr.mxu0 0.0
    %1373 = vmatpush1.msra.mxu0 0.0
    %1374 = vmatprep.subr.mxu0 0.0
    %1375 = vmatpush1.msra.mxu0 0.0
    %1376 = vmatprep.subr.mxu0 0.0
    %1377 = vmatpush1.msra.mxu0 0.0
    %1378 = vmatprep.subr.mxu0 0.0
    %1379 = vmatpush1.msra.mxu0 0.0
    %1380 = vmatprep.subr.mxu0 0.0
    %1381 = vmatpush1.msra.mxu0 0.0
    %1382 = vmatprep.subr.mxu0 0.0
    %1383 = vmatpush1.msra.mxu0 0.0
    %1384 = vmatprep.subr.mxu0 0.0
    %1385 = vmatpush1.msra.mxu0 0.0
    %1386 = vmatprep.subr.mxu0 0.0
    %1387 = vmatpush1.msra.mxu0 0.0
    %1388 = vmatprep.subr.mxu0 0.0
    %1389 = vmatpush1.msra.mxu0 0.0
    %1390 = vmatprep.subr.mxu0 0.0
    %1391 = vmatpush1.msra.mxu0 0.0
    %1392 = vmatprep.subr.mxu0 0.0
    %1393 = vmatpush1.msra.mxu0 0.0
    %1394 = vmatprep.subr.mxu0 0.0
    %1395 = vmatpush1.msra.mxu0 0.0
    %1396 = vmatprep.subr.mxu0 0.0
    %1397 = vmatpush1.msra.mxu0 0.0
    %1398 = vmatprep.subr.mxu0 0.0
    %1399 = vmatpush1.msra.mxu0 0.0
    %1400 = vmatprep.subr.mxu0 0.0
    %1401 = vmatpush1.msra.mxu0 0.0
    %1402 = vmatprep.subr.mxu0 0.0
    %1403 = vmatpush1.msra.mxu0 0.0
    %1404 = vmatprep.subr.mxu0 0.0
    %1405 = vmatpush1.msra.mxu0 0.0
    %1406 = vmatprep.subr.mxu0 0.0
    %1407 = vmatpush1.msra.mxu0 0.0
    %1408 = vmatprep.subr.mxu0 0.0
    %1409 = vmatpush1.msra.mxu0 0.0
    %1410 = vmatprep.subr.mxu0 0.0
    %1411 = vmatpush1.msra.mxu0 0.0
    %1412 = vmatprep.subr.mxu0 0.0
    %1413 = vmatpush1.msra.mxu0 0.0
    %1414 = vmatprep.subr.mxu0 0.0
    %1415 = vmatpush1.msra.mxu0 0.0
    %1416 = vmatprep.subr.mxu0 0.0
    %1417 = vmatpush1.msra.mxu0 0.0
    %1418 = vmatprep.mubr.f32.mxu0 0.0
    %v1419 = vand.u32 %v938, 4294901760
    %1420 = vmatmul.mubr.f32.gmra.mrb[0].mxu0 %v1419
    %v1421 = vpop.f32.mrb[0].mxu0
    %v1422 = vadd.f32 %v1347, %v1421
    %v1423 = vpop.f32.mrb[0].mxu0
    %1424 = vdwg.mxu0
    %v1425 = vxor.u32 %v1422, 2147483648
    %v1426 = vmul.f32 %v1425, 1.442695
    %v1427 = vpow.pop %v1426
    %v1428 = vadd.f32 %v1427, 1.0
    %v1429 = vrcp.pop %v1428
    %v1430 = vmul.f32 1.0, %v1429
    %vm1431 = vcmask 64512
    %1432 = vst.msk [vmem:[#allocation2] sm:$0xff] %vm1431, %v1430
    // Predicated region
    $region22: #{tpu_custom_call.1} parent=1 // pred_check
      _
    $region23: #{tpu_custom_call.1} parent=1 // pred_check_branch
      %1434 = sbr.rel (0) target = $region25
    $region24: #{tpu_custom_call.1} parent=1 // pred_region
      %s1436 = ssub.s32 128, 128
      %1437 = vsyncadd [#allocation3], %s1436
      %s1439 = sshll.u32 [#allocation2], 4
      %s1440 = int_to_ptr.vmem [resolvable:$true] %s1439
      %1442 = dma.vmem_to_hbm [thread:$0]  %s1440, 128, %s5, [#allocation3]
    $region25: #{tpu_custom_call.1} parent=1 // pred_fallthru
      _
    // Predicated region
    $region26: #{tpu_custom_call.1} parent=1 // pred_check
      _
    $region27: #{tpu_custom_call.1} parent=1 // pred_check_branch
      %1444 = sbr.rel (0) target = $region29
    $region28: #{tpu_custom_call.1} parent=1 // pred_region
      %1445 = dma.done [#allocation3], 128
    $region29: #{tpu_custom_call.1} parent=1 // pred_fallthru
      _
    %1446 = vsyncpa [#allocation3], 1

</llo_original>
